<compile_context>
chip_gen: v5e
topology: v5e:2x2
jax: 0.10.0
libtpu: 0.0.40
codegen_flags: <defaults>
</compile_context>

<pallas_src>
import jax
import jax.numpy as jnp
from jax.experimental import pallas as pl
from jax.experimental.pallas import tpu as pltpu

_LANE_CHOICES = (512, 384, 256, 128)   # lane-dense widths (multiples of 128)
_SMALL_BYTES = 4 << 20                 # below this, use the plain-XLA fast path


def _chip_tuning():
    """Return (tile_bytes_per_input, vmem_limit_bytes, use_core_parallel) for
    the local TPU generation, with a conservative fallback."""
    tile_bytes, vmem_limit, core_parallel = 4 << 20, 32 << 20, False
    try:
        info_fn = getattr(pltpu, "get_tpu_info", None)
        vmem_cap = getattr(info_fn(), "vmem_capacity_bytes", None) if info_fn else None
        if vmem_cap is not None:
            if vmem_cap >= (100 << 20):
                # v5e / v6e: 128 MiB physical VMEM -> bigger tiles, raised limit.
                tile_bytes, vmem_limit = 8 << 20, 64 << 20
            else:
                # v7x: 64 MiB per TensorCore -> cap tiles, engage both TCs.
                tile_bytes, vmem_limit = 4 << 20, 32 << 20
                core_parallel = getattr(pltpu, "CORE_PARALLEL", None) is not None
    except Exception:
        pass
    return tile_bytes, vmem_limit, core_parallel


def _make_mve_kernel(total_rows, tile_rows, lanes, need_mask):
    def _block_partial(contrib, out_ref):
        # Lane-dense per-block partial (independent per grid step -> parallel).
        out_ref[...] = jnp.full(out_ref.shape, jnp.sum(contrib), dtype=jnp.float32)

    def kernel(x_ref, s2_ref, y_ref, out_ref):
        x = x_ref[...].astype(jnp.float32)
        s2 = s2_ref[...].astype(jnp.float32)
        y = y_ref[...].astype(jnp.float32)

        d = y - x
        contrib = 0.5 * (d * d * jnp.exp(-s2) + s2)

        if not need_mask:
            _block_partial(contrib, out_ref)
        else:
            i = pl.program_id(0)
            last = pl.num_programs(0) - 1

            @pl.when(i != last)
            def _():
                _block_partial(contrib, out_ref)

            @pl.when(i == last)
            def _():
                # Only the final row-block pays for the tail mask.  Keep the
                # SELECT form (jnp.where): out-of-bounds rows may hold garbage
                # that became Inf/NaN above and must not be multiplied.
                row_ids = i * tile_rows + jax.lax.broadcasted_iota(
                    jnp.int32, (tile_rows, lanes), 0)
                masked = jnp.where(row_ids < total_rows, contrib, jnp.float32(0.0))
                _block_partial(masked, out_ref)

    return kernel


def sequence_mve_loss(inp, s2, target, *, use_pallas=None, tile_bytes=None):
    """inp, s2, target: (B, T, D) arrays. Returns scalar float32 loss matching
    SequenceMVELoss.forward (size_average has no effect in the reference)."""
    B, T, D = inp.shape
    N = B * T * D
    itemsize = jnp.dtype(inp.dtype).itemsize

    if use_pallas is None:
        use_pallas = (3 * N * itemsize) >= _SMALL_BYTES
    if not use_pallas:
        # Fused-XLA fast path: pallas_call launch overhead dominates at tiny N.
        d = (target - inp).astype(jnp.float32)
        s2f = s2.astype(jnp.float32)
        return jnp.sum(0.5 * (d * d * jnp.exp(-s2f) + s2f)) * jnp.float32(1.0 / B)

    chip_tile_bytes, vmem_limit, core_parallel = _chip_tuning()
    if tile_bytes is None:
        tile_bytes = chip_tile_bytes

    # Lane-dense 2D view (metadata-only contiguous reshape): widest multiple of
    # 128 dividing N, else the (B*T, D) fallback (block last dim == full dim).
    lanes = None
    for cand in _LANE_CHOICES:
        if N % cand == 0:
            lanes = cand
            break
    if lanes is None:
        lanes = D
    rows = N // lanes

    def as2d(a):
        return a.reshape(rows, lanes)

    # Row-block sizing: ~tile_bytes per input tile, multiple of 8 (or full dim).
    target_rows = max(8, tile_bytes // (lanes * itemsize))
    if rows <= target_rows:
        tile_rows = rows      # single block == full dims; no (8,128) constraint
        grid = 1
    else:
        tile_rows = max(8, (target_rows // 8) * 8)
        grid = pl.cdiv(rows, tile_rows)
    need_mask = (rows % tile_rows) != 0

    kernel = _make_mve_kernel(rows, tile_rows, lanes, need_mask)

    in_spec = pl.BlockSpec((tile_rows, lanes), lambda i: (i, 0))
    out_spec = pl.BlockSpec((1, 8, 128), lambda i: (i, 0, 0))

    grid_sem = pltpu.CORE_PARALLEL if core_parallel else "parallel"

    cost = pl.CostEstimate(
        flops=8 * N,
        transcendentals=N,
        bytes_accessed=3 * N * itemsize + grid * 8 * 128 * 4,
    )

    partials = pl.pallas_call(
        kernel,
        out_shape=jax.ShapeDtypeStruct((grid, 8, 128), jnp.float32),
        grid_spec=pltpu.PrefetchScalarGridSpec(
            num_scalar_prefetch=0,
            grid=(grid,),
            in_specs=[in_spec, in_spec, in_spec],
            out_specs=out_spec,
        ),
        compiler_params=pltpu.CompilerParams(
            dimension_semantics=(grid_sem,),
            vmem_limit_bytes=vmem_limit,
        ),
        cost_estimate=cost,
    )(as2d(inp), as2d(s2), as2d(target))

    # Tiny final reduction + single 1/B scale (hoisted out of the kernel).
    return jnp.sum(partials[:, 0, 0]) * jnp.float32(1.0 / B)


def _reference_loss(inp, s2, target):
    # Pure-JAX reference mirroring the PyTorch per-timestep loop.
    B = inp.shape[0]
    quad = (target - inp) ** 2 * jnp.exp(-s2)
    per_t = jnp.sum(0.5 * (quad + s2), axis=(0, 2)) / B
    return jnp.sum(per_t)


def _check(B, T, D, key, **kwargs):
    k1, k2, k3 = jax.random.split(key, 3)
    inp = jax.random.normal(k1, (B, T, D), dtype=jnp.float32)
    s2 = jax.random.normal(k2, (B, T, D), dtype=jnp.float32) * 0.5
    target = jax.random.normal(k3, (B, T, D), dtype=jnp.float32)

    loss = sequence_mve_loss(inp, s2, target, **kwargs)
    jax.block_until_ready(loss)

    ref = _reference_loss(inp, s2, target)
    assert jnp.allclose(loss, ref, rtol=1e-4, atol=1e-5), (B, T, D, loss, ref)
    return loss


if __name__ == "__main__":
    key = jax.random.PRNGKey(0)
    keys = jax.random.split(key, 4)

    # Primary small shape (module's (B, T, D) sequence inputs) via the Pallas
    # kernel (single lane-dense block).
    _check(2, 8, 32, keys[0], use_pallas=True)
    # Awkward D: no 128-multiple divides N -> (B*T, D) fallback view.
    _check(3, 7, 96, keys[1], use_pallas=True)
    # Multi-block streaming path with the pl.when-gated masked last row-block.
    _check(2, 300, 512, keys[2], use_pallas=True, tile_bytes=64 << 10)
    # Auto dispatch: tiny input takes the fused-XLA fast path.
    _check(2, 8, 32, keys[3])

    print("KERNEL_OK")
</pallas_src>

<mosaic_0001>
module attributes {stable_mosaic.version = 11 : i64} {
  func.func @kernel(%arg0: i32, %arg1: memref<1x512xf32, #tpu.memory_space<vmem>>, %arg2: memref<1x512xf32, #tpu.memory_space<vmem>>, %arg3: memref<1x512xf32, #tpu.memory_space<vmem>>, %arg4: memref<1x8x128xf32, #tpu.memory_space<vmem>>) attributes {dimension_semantics = [#tpu.dimension_semantics<parallel>], iteration_bounds = array<i64: 1>, scalar_prefetch = 0 : i64, scratch_operands = 0 : i64, tpu.core_type = #tpu.core_type<tc>, window_params = [{transform_indices = @transform_0, window_bounds = array<i64: 1, 512>}, {transform_indices = @transform_1, window_bounds = array<i64: 1, 512>}, {transform_indices = @transform_2, window_bounds = array<i64: 1, 512>}, {transform_indices = @transform_3, window_bounds = array<i64: 1, 8, 128>}]} {
    %c0 = arith.constant 0 : index
    %c0_0 = arith.constant 0 : index
    %0 = vector.load %arg1[%c0, %c0_0] : memref<1x512xf32, #tpu.memory_space<vmem>>, vector<1x512xf32>
    %c0_1 = arith.constant 0 : index
    %c0_2 = arith.constant 0 : index
    %1 = vector.load %arg2[%c0_1, %c0_2] : memref<1x512xf32, #tpu.memory_space<vmem>>, vector<1x512xf32>
    %c0_3 = arith.constant 0 : index
    %c0_4 = arith.constant 0 : index
    %2 = vector.load %arg3[%c0_3, %c0_4] : memref<1x512xf32, #tpu.memory_space<vmem>>, vector<1x512xf32>
    %3 = arith.subf %2, %0 : vector<1x512xf32>
    %4 = arith.mulf %3, %3 : vector<1x512xf32>
    %cst = arith.constant 0.000000e+00 : f32
    %5 = vector.broadcast %cst : f32 to vector<1x512xf32>
    %6 = arith.subf %5, %1 : vector<1x512xf32>
    %7 = math.exp %6 : vector<1x512xf32>
    %8 = arith.mulf %4, %7 : vector<1x512xf32>
    %9 = arith.addf %8, %1 : vector<1x512xf32>
    %cst_5 = arith.constant 5.000000e-01 : f32
    %10 = vector.broadcast %cst_5 : f32 to vector<1x512xf32>
    %11 = arith.mulf %10, %9 : vector<1x512xf32>
    %12 = vector.shape_cast %11 : vector<1x512xf32> to vector<1x1x512xf32>
    %cst_6 = arith.constant dense<0.000000e+00> : vector<1xf32>
    %13 = vector.multi_reduction <add>, %12, %cst_6 [1, 2] : vector<1x1x512xf32> to vector<1xf32>
    %14 = vector.shape_cast %13 : vector<1xf32> to vector<1x1x1xf32>
    %15 = vector.extract %14[0, 0, 0] : f32 from vector<1x1x1xf32>
    %16 = vector.broadcast %15 : f32 to vector<1x8x128xf32>
    %c0_7 = arith.constant 0 : index
    %c0_8 = arith.constant 0 : index
    %c0_9 = arith.constant 0 : index
    %17 = vector.load %arg4[%c0_7, %c0_8, %c0_9] : memref<1x8x128xf32, #tpu.memory_space<vmem>>, vector<1x8x128xf32>
    tpu.vector_store %arg4[%c0_7, %c0_8, %c0_9], %16 {strides = array<i32>} : memref<1x8x128xf32, #tpu.memory_space<vmem>>, vector<1x8x128xf32>,
    return
  }
  func.func @transform_0(%arg0: i32) -> (i32, i32) {
    %c0_i32 = arith.constant 0 : i32
    %c0_i32_0 = arith.constant 0 : i32
    return %arg0, %c0_i32 : i32, i32
  }
  func.func @transform_1(%arg0: i32) -> (i32, i32) {
    %c0_i32 = arith.constant 0 : i32
    %c0_i32_0 = arith.constant 0 : i32
    return %arg0, %c0_i32 : i32, i32
  }
  func.func @transform_2(%arg0: i32) -> (i32, i32) {
    %c0_i32 = arith.constant 0 : i32
    %c0_i32_0 = arith.constant 0 : i32
    return %arg0, %c0_i32 : i32, i32
  }
  func.func @transform_3(%arg0: i32) -> (i32, i32, i32) {
    %c0_i32 = arith.constant 0 : i32
    %c0_i32_0 = arith.constant 0 : i32
    %c0_i32_1 = arith.constant 0 : i32
    return %arg0, %c0_i32, %c0_i32_0 : i32, i32, i32
  }
}

</mosaic_0001>

<llo_original>
// kernel: tpu_custom_call.1
$region0: #{tpu_custom_call.1}
  #allocation0 [shape = 'u32[]', space=smem, size = 0x4, offset = 0x4, fixed_abs, tag = 'smem constant byte address 0x4 - core index']
  #allocation1 [shape = 'u32[72,128]{1,0:T(1,128)}', space=vmem, size = 0x9000, scoped, tag = 'internal scratch']
  %s0 = inlined_call_operand.hbm [shape: f32[1,512], index: 0, kind: input, shape index: {}]
  %s1 = inlined_call_operand.hbm [shape: f32[1,512], index: 1, kind: input, shape index: {}]
  %s2 = inlined_call_operand.hbm [shape: f32[1,512], index: 2, kind: input, shape index: {}]
  %s3 = inlined_call_operand.hbm [shape: f32[1,8,128], index: 3, kind: output, shape index: {}]
  %s4 = sld [smem:[#allocation0]]
  $region34: #{tpu_custom_call.1} parent=0
    _
  %s6 = ssub.s32 1, %s4
  %s7 = scalar_select 0, %s6, %s4
  $region1: #{tpu_custom_call.1} parent=0
    #allocation2 [shape = 'u8[2048]{0}', space=vmem, size = 0x800, scoped, tag = 'input window, operand 0, single buffered']
    #allocation3 [shape = 's32[1]{0}', space=sflag, size = 0x4, scoped, tag = 'scoped memory for tpu_custom_call.1']
    #allocation4 [shape = 's32[1]{0}', space=sflag, size = 0x4, scoped, tag = 'scoped memory for tpu_custom_call.1']
    #allocation5 [shape = 'u8[2048]{0}', space=vmem, size = 0x800, scoped, tag = 'input window, operand 1, single buffered']
    #allocation6 [shape = 's32[1]{0}', space=sflag, size = 0x4, scoped, tag = 'scoped memory for tpu_custom_call.1']
    #allocation7 [shape = 'u8[2048]{0}', space=vmem, size = 0x800, scoped, tag = 'input window, operand 2, single buffered']
    #allocation8 [shape = 'u8[4096]{0}', space=vmem, size = 0x1000, scoped, tag = 'output window, operand 0, single buffered']
    %8 = vsyncpa [#allocation3], 0
    %9 = vsyncpa [#allocation6], 0
    %10 = vsyncpa [#allocation4], 0
    // Predicated region
    $region2: #{tpu_custom_call.1} parent=1 // pred_check
      _
    $region3: #{tpu_custom_call.1} parent=1 // pred_check_branch
      %12 = sbr.rel (0) target = $region5
    $region4: #{tpu_custom_call.1} parent=1 // pred_region
      %14 = vsyncadd [#allocation3], 0
      %s16 = sshll.u32 %s0, 4
      %s17 = int_to_ptr.hbm [resolvable:$true] %s16
      %s18 = sshll.u32 [#allocation2], 4
      %s19 = int_to_ptr.vmem [resolvable:$true] %s18
      %21 = dma.hbm_to_vmem [thread:$0]  %s17, 64, %s19, [#allocation3]
    $region5: #{tpu_custom_call.1} parent=1 // pred_fallthru
      _
    // Predicated region
    $region6: #{tpu_custom_call.1} parent=1 // pred_check
      _
    $region7: #{tpu_custom_call.1} parent=1 // pred_check_branch
      %23 = sbr.rel (0) target = $region9
    $region8: #{tpu_custom_call.1} parent=1 // pred_region
      %25 = vsyncadd [#allocation6], 0
      %s27 = sshll.u32 %s1, 4
      %s28 = int_to_ptr.hbm [resolvable:$true] %s27
      %s29 = sshll.u32 [#allocation5], 4
      %s30 = int_to_ptr.vmem [resolvable:$true] %s29
      %32 = dma.hbm_to_vmem [thread:$0]  %s28, 64, %s30, [#allocation6]
    $region9: #{tpu_custom_call.1} parent=1 // pred_fallthru
      _
    // Predicated region
    $region10: #{tpu_custom_call.1} parent=1 // pred_check
      _
    $region11: #{tpu_custom_call.1} parent=1 // pred_check_branch
      %34 = sbr.rel (0) target = $region13
    $region12: #{tpu_custom_call.1} parent=1 // pred_region
      %36 = vsyncadd [#allocation6], 0
      %s38 = sshll.u32 %s2, 4
      %s39 = int_to_ptr.hbm [resolvable:$true] %s38
      %s40 = sshll.u32 [#allocation7], 4
      %s41 = int_to_ptr.vmem [resolvable:$true] %s40
      %43 = dma.hbm_to_vmem [thread:$0]  %s39, 64, %s41, [#allocation6]
    $region13: #{tpu_custom_call.1} parent=1 // pred_fallthru
      _
    // Predicated region
    $region14: #{tpu_custom_call.1} parent=1 // pred_check
      _
    $region15: #{tpu_custom_call.1} parent=1 // pred_check_branch
      %45 = sbr.rel (0) target = $region17
    $region16: #{tpu_custom_call.1} parent=1 // pred_region
      %47 = dma.done [#allocation3], 64
    $region17: #{tpu_custom_call.1} parent=1 // pred_fallthru
      _
    // Predicated region
    $region18: #{tpu_custom_call.1} parent=1 // pred_check
      _
    $region19: #{tpu_custom_call.1} parent=1 // pred_check_branch
      %49 = sbr.rel (0) target = $region21
    $region20: #{tpu_custom_call.1} parent=1 // pred_region
      %51 = dma.done [#allocation6], 64
    $region21: #{tpu_custom_call.1} parent=1 // pred_fallthru
      _
    // Predicated region
    $region22: #{tpu_custom_call.1} parent=1 // pred_check
      _
    $region23: #{tpu_custom_call.1} parent=1 // pred_check_branch
      %53 = sbr.rel (0) target = $region25
    $region24: #{tpu_custom_call.1} parent=1 // pred_region
      %55 = dma.done [#allocation6], 64
    $region25: #{tpu_custom_call.1} parent=1 // pred_fallthru
      _
    %v56 = vld [vmem:[#allocation2] sm:$0xf]
    %v57 = vld [vmem:[#allocation5] sm:$0xf]
    %v58 = vld [vmem:[#allocation7] sm:$0xf]
    %v59 = vsub.f32 %v58, %v56
    %v60 = vmul.f32 %v59, %v59
    %v61 = vsub.f32 0.0, %v57
    %v62 = vmul.f32 %v61, 1.442695
    %v63 = vpow.pop %v62
    %v64 = vmul.f32 %v60, %v63
    %v65 = vadd.f32 %v64, %v57
    %v66 = vmul.f32 %v65, 0.5
    %v68 = vperm.slane %v66, 0
    %v69 = vperm.slane %v66, 1
    %v70 = vperm.slane %v66, 2
    %v71 = vperm.slane %v66, 3
    %vm76 = vcmask 1040384
    %v77 = vsel %vm76, %v68, 0.0
    %v78 = vsel %vm76, %v69, 0.0
    %v79 = vadd.f32 %v77, %v78
    %v80 = vsel %vm76, %v70, 0.0
    %v81 = vadd.f32 %v79, %v80
    %v82 = vsel %vm76, %v71, 0.0
    %v83 = vadd.f32 %v81, %v82
    %84 = vadd.xlane.f32.xlu0 %v83
    %v85 = vpop.xlane.xlu0 %84
    %v86 = vrot.slane %v85, 4
    %v87 = vadd.f32 %v85, %v86
    %v88 = vrot.slane %v87, 2
    %v89 = vadd.f32 %v87, %v88
    %v90 = vrot.slane %v89, 1
    %v91 = vadd.f32 %v89, %v90
    %s92 = vtos %v91
    %v93 = vstv %s92
    %94 = vst [vmem:[#allocation8] sm:$0xff] %v93
    // Predicated region
    $region26: #{tpu_custom_call.1} parent=1 // pred_check
      _
    $region27: #{tpu_custom_call.1} parent=1 // pred_check_branch
      %96 = sbr.rel (0) target = $region29
    $region28: #{tpu_custom_call.1} parent=1 // pred_region
      %98 = vsyncadd [#allocation4], 0
      %s100 = sshll.u32 [#allocation8], 4
      %s101 = int_to_ptr.vmem [resolvable:$true] %s100
      %s102 = sshll.u32 %s3, 4
      %s103 = int_to_ptr.hbm [resolvable:$true] %s102
      %105 = dma.vmem_to_hbm [thread:$0]  %s101, 128, %s103, [#allocation4]
    $region29: #{tpu_custom_call.1} parent=1 // pred_fallthru
      _
    // Predicated region
    $region30: #{tpu_custom_call.1} parent=1 // pred_check
      _
    $region31: #{tpu_custom_call.1} parent=1 // pred_check_branch
      %107 = sbr.rel (0) target = $region33
    $region32: #{tpu_custom_call.1} parent=1 // pred_region
      %109 = dma.done [#allocation4], 128
    $region33: #{tpu_custom_call.1} parent=1 // pred_fallthru
      _
    %110 = vsyncpa [#allocation3], 1
    %111 = vsyncpa [#allocation6], 1
    %112 = vsyncpa [#allocation4], 1

</llo_original>
